<compile_context>
chip_gen: v5e
topology: v5e:2x2
jax: 0.10.0
libtpu: 0.0.40
codegen_flags: <defaults>
</compile_context>

<pallas_src>
import functools

import jax
import jax.numpy as jnp
from jax.experimental import pallas as pl
from jax.experimental.pallas import tpu as pltpu

_LANE = 128


def _margin_loss_kernel(x_ref, y_ref, o_ref, acc_ref, *, margin, downweight):
    i = pl.program_id(1)  # inner ("arbitrary") reduction axis

    @pl.when(i == 0)
    def _init():
        acc_ref[...] = jnp.zeros_like(acc_ref)

    x = x_ref[...].astype(jnp.float32)
    y = y_ref[...].astype(jnp.float32)

    logits = x - 0.5
    positive_cost = y * jnp.maximum(margin - logits, 0.0) ** 2
    negative_cost = (1.0 - y) * jnp.maximum(logits + margin, 0.0) ** 2
    cost = 0.5 * (positive_cost + downweight * negative_cost)

    # Fold the (block_rows, 128) cost block into the (8, 128) accumulator with
    # plain VPU adds (no cross-lane reduction inside the hot loop).
    br, lanes = cost.shape
    acc_ref[...] += jnp.sum(cost.reshape(br // 8, 8, lanes), axis=0)

    @pl.when(i == pl.num_programs(1) - 1)
    def _finalize():
        o_ref[0] = acc_ref[...]


def _round_up(a, b):
    return (a + b - 1) // b * b


def margin_loss(raw_logits, labels, invalid=None, *, margin=0.4, downweight=0.5,
                block_rows=4096, num_splits=2):
    """Pallas implementation of MarginLoss(margin, downweight).forward for
    2-D inputs with class_weight=None and reduction='mean'.

    raw_logits: [N, C] float (any float dtype; streamed natively, f32 math)
    labels:     [N, C] float (one-hot / multi-hot)
    invalid:    ignored for the 2-D path (matches the PyTorch module).
    """
    # TODO(synk): the num_dims > 2 path of the PyTorch module applies a ragged
    # boolean mask (invalid == 0) before the loss; that data-dependent
    # compaction has no clean static-shape Pallas equivalent and is not
    # implemented here. class_weight / reduction != 'mean' paths also omitted
    # (module defaults).
    del invalid

    n, c = raw_logits.shape
    assert labels.shape == (n, c)
    total = n * c

    # Lane-dense view: flatten to [rows_padded, 128].
    rows_needed = -(-total // _LANE)
    block_rows = max(8, min(_round_up(block_rows, 8), _round_up(rows_needed, 8)))
    chunk_rows = block_rows * num_splits
    rows_padded = _round_up(max(rows_needed, 1), chunk_rows)
    pad = rows_padded * _LANE - total

    # Padding is exactly zero-cost: labels=0 kills the positive term and
    # pad_val makes relu(logits + margin) == 0 (with ~1.0 of slack so low
    # precision input dtypes stay safe).
    pad_val = 0.5 - float(margin) - 1.0
    x_flat = raw_logits.reshape(-1)
    y_flat = labels.reshape(-1)
    if pad:
        x_flat = jnp.pad(x_flat, (0, pad), constant_values=pad_val)
        y_flat = jnp.pad(y_flat, (0, pad), constant_values=0)
    x2 = x_flat.reshape(rows_padded, _LANE)
    y2 = y_flat.reshape(rows_padded, _LANE)

    steps = rows_padded // chunk_rows  # inner (reduction) grid extent per split

    kernel = functools.partial(
        _margin_loss_kernel, margin=float(margin), downweight=float(downweight))

    partials = pl.pallas_call(
        kernel,
        out_shape=jax.ShapeDtypeStruct((num_splits, 8, _LANE), jnp.float32),
        grid_spec=pltpu.PrefetchScalarGridSpec(
            num_scalar_prefetch=0,
            grid=(num_splits, steps),
            in_specs=[
                pl.BlockSpec((block_rows, _LANE), lambda s, i: (s * steps + i, 0)),
                pl.BlockSpec((block_rows, _LANE), lambda s, i: (s * steps + i, 0)),
            ],
            out_specs=pl.BlockSpec((1, 8, _LANE), lambda s, i: (s, 0, 0)),
            scratch_shapes=[pltpu.VMEM((8, _LANE), jnp.float32)],
        ),
        compiler_params=pltpu.CompilerParams(
            # Outer batch-split axis is parallel (each split has its own
            # accumulator + output slot); inner axis carries the accumulator.
            dimension_semantics=("parallel", "arbitrary"),
            vmem_limit_bytes=48 * 1024 * 1024,
        ),
    )(x2, y2)

    # Tiny final cross-lane reduction + mean over the batch, outside the kernel.
    return jnp.sum(partials) / jnp.float32(n)


def _margin_loss_ref(raw_logits, labels, margin=0.4, downweight=0.5):
    logits = raw_logits.astype(jnp.float32) - 0.5
    pos = labels.astype(jnp.float32) * jnp.maximum(margin - logits, 0.0) ** 2
    neg = (1.0 - labels.astype(jnp.float32)) * jnp.maximum(logits + margin, 0.0) ** 2
    loss = jnp.sum(0.5 * pos + downweight * 0.5 * neg, axis=1)
    return jnp.mean(loss)


if __name__ == "__main__":
    key = jax.random.PRNGKey(0)
    k1, k2, k3, k4 = jax.random.split(key, 4)

    # Small 2-D logits: [batch, classes]
    N, C = 16, 32
    raw_logits = jax.random.uniform(k1, (N, C), dtype=jnp.float32)
    label_idx = jax.random.randint(k2, (N,), 0, C)
    labels = jax.nn.one_hot(label_idx, C, dtype=jnp.float32)
    invalid = jnp.zeros((N,), dtype=jnp.int32)  # unused in 2-D path

    loss = jax.block_until_ready(margin_loss(raw_logits, labels, invalid))
    ref = _margin_loss_ref(raw_logits, labels)
    assert jnp.allclose(loss, ref, rtol=1e-5, atol=1e-6), (loss, ref)

    # Second small case with awkward (non-aligned) shape to exercise the
    # zero-cost padding path.
    N2, C2 = 7, 20
    raw_logits2 = jax.random.uniform(k3, (N2, C2), dtype=jnp.float32) * 2.0 - 0.5
    label_idx2 = jax.random.randint(k4, (N2,), 0, C2)
    labels2 = jax.nn.one_hot(label_idx2, C2, dtype=jnp.float32)

    loss2 = jax.block_until_ready(margin_loss(raw_logits2, labels2, None))
    ref2 = _margin_loss_ref(raw_logits2, labels2)
    assert jnp.allclose(loss2, ref2, rtol=1e-5, atol=1e-6), (loss2, ref2)

    print("KERNEL_OK")
</pallas_src>

<mosaic_0001>
module attributes {stable_mosaic.version = 11 : i64} {
  func.func @_margin_loss_kernel(%arg0: i32, %arg1: i32, %arg2: memref<8x128xf32, #tpu.memory_space<vmem>>, %arg3: memref<8x128xf32, #tpu.memory_space<vmem>>, %arg4: memref<1x8x128xf32, #tpu.memory_space<vmem>>, %arg5: memref<8x128xf32, #tpu.memory_space<vmem>>) attributes {dimension_semantics = [#tpu.dimension_semantics<parallel>, #tpu.dimension_semantics<arbitrary>], iteration_bounds = array<i64: 2, 1>, scalar_prefetch = 0 : i64, scratch_operands = 1 : i64, tpu.core_type = #tpu.core_type<tc>, window_params = [{transform_indices = @transform_0, window_bounds = array<i64: 8, 128>}, {transform_indices = @transform_1, window_bounds = array<i64: 8, 128>}, {transform_indices = @transform_2, window_bounds = array<i64: 1, 8, 128>}]} {
    %c0_i32 = arith.constant 0 : i32
    %0 = arith.cmpi eq, %arg1, %c0_i32 : i32
    %1 = arith.extui %0 : i1 to i32
    %c0_i32_0 = arith.constant 0 : i32
    %2 = arith.cmpi ne, %1, %c0_i32_0 : i32
    scf.if %2 {
      %cst_18 = arith.constant 0.000000e+00 : f32
      %34 = vector.broadcast %cst_18 : f32 to vector<8x128xf32>
      %c0_19 = arith.constant 0 : index
      %c0_20 = arith.constant 0 : index
      %35 = vector.load %arg5[%c0_19, %c0_20] : memref<8x128xf32, #tpu.memory_space<vmem>>, vector<8x128xf32>
      tpu.vector_store %arg5[%c0_19, %c0_20], %34 {strides = array<i32>} : memref<8x128xf32, #tpu.memory_space<vmem>>, vector<8x128xf32>,
    } else {
    }
    %c0 = arith.constant 0 : index
    %c0_1 = arith.constant 0 : index
    %3 = vector.load %arg2[%c0, %c0_1] : memref<8x128xf32, #tpu.memory_space<vmem>>, vector<8x128xf32>
    %c0_2 = arith.constant 0 : index
    %c0_3 = arith.constant 0 : index
    %4 = vector.load %arg3[%c0_2, %c0_3] : memref<8x128xf32, #tpu.memory_space<vmem>>, vector<8x128xf32>
    %cst = arith.constant 5.000000e-01 : f32
    %5 = vector.broadcast %cst : f32 to vector<8x128xf32>
    %6 = arith.subf %3, %5 : vector<8x128xf32>
    %cst_4 = arith.constant 4.000000e-01 : f32
    %7 = vector.broadcast %cst_4 : f32 to vector<8x128xf32>
    %8 = arith.subf %7, %6 : vector<8x128xf32>
    %cst_5 = arith.constant 0.000000e+00 : f32
    %9 = vector.broadcast %cst_5 : f32 to vector<8x128xf32>
    %10 = arith.maximumf %8, %9 : vector<8x128xf32>
    %11 = arith.mulf %10, %10 : vector<8x128xf32>
    %12 = arith.mulf %4, %11 : vector<8x128xf32>
    %cst_6 = arith.constant 1.000000e+00 : f32
    %13 = vector.broadcast %cst_6 : f32 to vector<8x128xf32>
    %14 = arith.subf %13, %4 : vector<8x128xf32>
    %cst_7 = arith.constant 4.000000e-01 : f32
    %15 = vector.broadcast %cst_7 : f32 to vector<8x128xf32>
    %16 = arith.addf %6, %15 : vector<8x128xf32>
    %cst_8 = arith.constant 0.000000e+00 : f32
    %17 = vector.broadcast %cst_8 : f32 to vector<8x128xf32>
    %18 = arith.maximumf %16, %17 : vector<8x128xf32>
    %19 = arith.mulf %18, %18 : vector<8x128xf32>
    %20 = arith.mulf %14, %19 : vector<8x128xf32>
    %cst_9 = arith.constant 5.000000e-01 : f32
    %21 = vector.broadcast %cst_9 : f32 to vector<8x128xf32>
    %22 = arith.mulf %21, %20 : vector<8x128xf32>
    %23 = arith.addf %12, %22 : vector<8x128xf32>
    %cst_10 = arith.constant 5.000000e-01 : f32
    %24 = vector.broadcast %cst_10 : f32 to vector<8x128xf32>
    %25 = arith.mulf %24, %23 : vector<8x128xf32>
    %c0_11 = arith.constant 0 : index
    %c0_12 = arith.constant 0 : index
    %26 = vector.load %arg5[%c0_11, %c0_12] : memref<8x128xf32, #tpu.memory_space<vmem>>, vector<8x128xf32>
    %27 = vector.shape_cast %25 : vector<8x128xf32> to vector<1x8x128xf32>
    %cst_13 = arith.constant dense<0.000000e+00> : vector<8x128xf32>
    %28 = vector.multi_reduction <add>, %27, %cst_13 [0] : vector<1x8x128xf32> to vector<8x128xf32>
    %29 = arith.addf %26, %28 : vector<8x128xf32>
    %c0_14 = arith.constant 0 : index
    %c0_15 = arith.constant 0 : index
    %30 = vector.load %arg5[%c0_14, %c0_15] : memref<8x128xf32, #tpu.memory_space<vmem>>, vector<8x128xf32>
    tpu.vector_store %arg5[%c0_14, %c0_15], %29 {strides = array<i32>} : memref<8x128xf32, #tpu.memory_space<vmem>>, vector<8x128xf32>,
    %c0_i32_16 = arith.constant 0 : i32
    %31 = arith.cmpi eq, %arg1, %c0_i32_16 : i32
    %32 = arith.extui %31 : i1 to i32
    %c0_i32_17 = arith.constant 0 : i32
    %33 = arith.cmpi ne, %32, %c0_i32_17 : i32
    scf.if %33 {
      %c0_18 = arith.constant 0 : index
      %c0_19 = arith.constant 0 : index
      %34 = vector.load %arg5[%c0_18, %c0_19] : memref<8x128xf32, #tpu.memory_space<vmem>>, vector<8x128xf32>
      %c0_20 = arith.constant 0 : index
      %c0_21 = arith.constant 0 : index
      %c0_22 = arith.constant 0 : index
      %35 = vector.load %arg4[%c0_20, %c0_21, %c0_22] : memref<1x8x128xf32, #tpu.memory_space<vmem>>, vector<1x8x128xf32>
      %36 = vector.shape_cast %35 : vector<1x8x128xf32> to vector<8x128xf32>
      %37 = vector.shape_cast %34 : vector<8x128xf32> to vector<1x8x128xf32>
      tpu.vector_store %arg4[%c0_20, %c0_21, %c0_22], %37 {strides = array<i32>} : memref<1x8x128xf32, #tpu.memory_space<vmem>>, vector<1x8x128xf32>,
    } else {
    }
    return
  }
  func.func @transform_0(%arg0: i32, %arg1: i32) -> (i32, i32) {
    %c1_i32 = arith.constant 1 : i32
    %0 = arith.muli %arg0, %c1_i32 : i32
    %1 = arith.addi %0, %arg1 : i32
    %c0_i32 = arith.constant 0 : i32
    %c0_i32_0 = arith.constant 0 : i32
    return %1, %c0_i32 : i32, i32
  }
  func.func @transform_1(%arg0: i32, %arg1: i32) -> (i32, i32) {
    %c1_i32 = arith.constant 1 : i32
    %0 = arith.muli %arg0, %c1_i32 : i32
    %1 = arith.addi %0, %arg1 : i32
    %c0_i32 = arith.constant 0 : i32
    %c0_i32_0 = arith.constant 0 : i32
    return %1, %c0_i32 : i32, i32
  }
  func.func @transform_2(%arg0: i32, %arg1: i32) -> (i32, i32, i32) {
    %c0_i32 = arith.constant 0 : i32
    %c0_i32_0 = arith.constant 0 : i32
    %c0_i32_1 = arith.constant 0 : i32
    return %arg0, %c0_i32, %c0_i32_0 : i32, i32, i32
  }
}

</mosaic_0001>

<llo_original>
// kernel: tpu_custom_call.1
$region0: #{tpu_custom_call.1}
  #allocation0 [shape = 'u32[]', space=smem, size = 0x4, offset = 0x4, fixed_abs, tag = 'smem constant byte address 0x4 - core index']
  #allocation1 [shape = 'u32[72,128]{1,0:T(1,128)}', space=vmem, size = 0x9000, scoped, tag = 'internal scratch']
  #allocation2 [shape = 'f32[8,128]{1,0:T(8,128)}', space=vmem, size = 0x1000, scoped, tag = 'scratch operand']
  %s0 = inlined_call_operand.hbm [shape: f32[16,128], index: 0, kind: input, shape index: {}]
  %s1 = inlined_call_operand.hbm [shape: f32[16,128], index: 1, kind: input, shape index: {}]
  %s2 = inlined_call_operand.hbm [shape: f32[2,8,128], index: 2, kind: output, shape index: {}]
  %s3 = sld [smem:[#allocation0]]
  $region57: #{tpu_custom_call.1} parent=0
    _
  %s5 = ssub.s32 1, %s3
  %s6 = scalar_select 0, %s5, %s3
  $region1: #{tpu_custom_call.1} parent=0
    #allocation3 [shape = 'u8[8192]{0}', space=vmem, size = 0x2000, scoped, tag = 'input window, operand 0']
    #allocation4 [shape = 's32[2]{0}', space=sflag, size = 0x8, scoped, tag = 'scoped memory for tpu_custom_call.1']
    #allocation5 [shape = 's32[2]{0}', space=sflag, size = 0x8, scoped, tag = 'scoped memory for tpu_custom_call.1']
    #allocation6 [shape = 'u8[8192]{0}', space=vmem, size = 0x2000, scoped, tag = 'input window, operand 1']
    #allocation7 [shape = 's32[2]{0}', space=sflag, size = 0x8, scoped, tag = 'scoped memory for tpu_custom_call.1']
    #allocation8 [shape = 'u8[8192]{0}', space=vmem, size = 0x2000, scoped, tag = 'output window, operand 0']
    %7 = vsyncpa [#allocation4], 0
    %s8 = scalar_lea.sflag [#allocation4], 1
    %9 = vsyncpa %s8, 0
    %10 = vsyncpa [#allocation7], 0
    %s11 = scalar_lea.sflag [#allocation7], 1
    %12 = vsyncpa %s11, 0
    %13 = vsyncpa [#allocation5], 0
    %s14 = scalar_lea.sflag [#allocation5], 1
    %15 = vsyncpa %s14, 0
    loop: start=0, step=1, limit=4
    $region2: #{tpu_custom_call.1} parent=1 // loop_pre_header
      _
    $region3: #{tpu_custom_call.1} parent=1 // loop_header
      %s17 = sphi 0, %s21
      %p18 = scmp.ge.s32.totalorder %s17, 4
      %s24 = sphi 0, %s36
      %s25 = sphi 0, %s32
      %s26 = sphi 0, %s24
      %s27 = sphi 0, %s25
      %s28 = sphi 0, %s26
      %s29 = sphi 0, %s27
      %s41 = sphi 0, %s43
      %s44 = sphi 0, %s41
      %s45 = sphi 0, %s44
      %s61 = sphi 0, %s45
      %s69 = sphi 0, %s71
      %s72 = sphi 0, %s69
      %s73 = sphi 0, %s72
      %s89 = sphi 0, %s73
      %s95 = sphi 0, %s97
      %s98 = sphi 0, %s95
      %s99 = sphi 0, %s98
      %s115 = sphi 0, %s99
    $region4: #{tpu_custom_call.1} parent=1 // loop_header_branch
      %20 = sbr.rel (%p18) target = $region8
    $region5: #{tpu_custom_call.1} parent=1 // loop_body
      %s22 = ssub.s32 %s17, 1
      %s23 = ssub.s32 %s17, 2
      %s30 = sadd.s32 1, %s25
      %p31 = scmp.ge.s32.totalorder %s30, 1
      %s32 = scalar_select %p31, 0, %s30
      %s33 = sadd.s32 1, %s24
      %s34 = scalar_select %p31, %s33, %s24
      %p35 = scmp.ge.s32.totalorder %s34, 2
      %s36 = scalar_select %p35, 0, %s34
      %s37 = sadd.s32 %s24, %s25
      %s38 = sadd.s32 %s36, %s32
      %s39 = ssub.s32 %s37, %s38
      %p40 = scmp.eq.s32.totalorder %s39, 0
      %s42 = sadd.s32 %s41, 1
      %s43 = scalar_select %p40, %s41, %s42
      %p46 = pneg %p40
      %p47 = scmp.eq.s32.totalorder %s17, 1
      %p48 = por %p46, %p47
      %p49 = scmp.ne.s32.totalorder %s41, %s44
      %p50 = scmp.eq.s32.totalorder %s17, 0
      %p51 = por %p49, %p50
      %p52 = scmp.ne.s32.totalorder %s41, %s44
      %p53 = scmp.eq.s32.totalorder %s22, 1
      %p54 = por %p52, %p53
      %p55 = scmp.ne.s32.totalorder %s44, %s45
      %p56 = scmp.eq.s32.totalorder %s22, 0
      %p57 = por %p55, %p56
      %p58 = scmp.ne.s32.totalorder %s44, %s45
      %p59 = scmp.eq.s32.totalorder %s23, 1
      %p60 = por %p58, %p59
      %p62 = scmp.ne.s32.totalorder %s45, %s61
      %p63 = scmp.eq.s32.totalorder %s23, 0
      %p64 = por %p62, %p63
      %s65 = sadd.s32 %s24, %s25
      %s66 = sadd.s32 %s36, %s32
      %s67 = ssub.s32 %s65, %s66
      %p68 = scmp.eq.s32.totalorder %s67, 0
      %s70 = sadd.s32 %s69, 1
      %s71 = scalar_select %p68, %s69, %s70
      %p74 = pneg %p68
      %p75 = scmp.eq.s32.totalorder %s17, 1
      %p76 = por %p74, %p75
      %p77 = scmp.ne.s32.totalorder %s69, %s72
      %p78 = scmp.eq.s32.totalorder %s17, 0
      %p79 = por %p77, %p78
      %p80 = scmp.ne.s32.totalorder %s69, %s72
      %p81 = scmp.eq.s32.totalorder %s22, 1
      %p82 = por %p80, %p81
      %p83 = scmp.ne.s32.totalorder %s72, %s73
      %p84 = scmp.eq.s32.totalorder %s22, 0
      %p85 = por %p83, %p84
      %p86 = scmp.ne.s32.totalorder %s72, %s73
      %p87 = scmp.eq.s32.totalorder %s23, 1
      %p88 = por %p86, %p87
      %p90 = scmp.ne.s32.totalorder %s73, %s89
      %p91 = scmp.eq.s32.totalorder %s23, 0
      %p92 = por %p90, %p91
      %s93 = ssub.s32 %s24, %s36
      %p94 = scmp.eq.s32.totalorder %s93, 0
      %s96 = sadd.s32 %s95, 1
      %s97 = scalar_select %p94, %s95, %s96
      %p100 = pneg %p94
      %p101 = scmp.eq.s32.totalorder %s17, 1
      %p102 = por %p100, %p101
      %p103 = scmp.ne.s32.totalorder %s95, %s98
      %p104 = scmp.eq.s32.totalorder %s17, 0
      %p105 = por %p103, %p104
      %p106 = scmp.ne.s32.totalorder %s95, %s98
      %p107 = scmp.eq.s32.totalorder %s22, 1
      %p108 = por %p106, %p107
      %p109 = scmp.ne.s32.totalorder %s98, %s99
      %p110 = scmp.eq.s32.totalorder %s22, 0
      %p111 = por %p109, %p110
      %p112 = scmp.ne.s32.totalorder %s98, %s99
      %p113 = scmp.eq.s32.totalorder %s23, 1
      %p114 = por %p112, %p113
      %p116 = scmp.ne.s32.totalorder %s99, %s115
      %p117 = scmp.eq.s32.totalorder %s23, 0
      %p118 = por %p116, %p117
      %p119 = scmp.le.s32.totalorder 1, %s17
      %p120 = scmp.lt.s32.totalorder %s17, 3
      %p121 = pnand %p119, %p120
      %p122 = pneg %p121
      // Predicated region
      $region9: #{tpu_custom_call.1} parent=5 // pred_check
        _
      $region10: #{tpu_custom_call.1} parent=5 // pred_check_branch
        %124 = sbr.rel (%p121) target = $region12
      $region11: #{tpu_custom_call.1} parent=5 // pred_region
        %s125 = ssub.s32 %s17, 1
      $region12: #{tpu_custom_call.1} parent=5 // pred_fallthru
        _
      %p126 = scmp.lt.s32.totalorder %s17, 2
      // Predicated region
      $region13: #{tpu_custom_call.1} parent=5 // pred_check
        %p127 = pneg %p126
      $region14: #{tpu_custom_call.1} parent=5 // pred_check_branch
        %129 = sbr.rel (%p127) target = $region16
      $region15: #{tpu_custom_call.1} parent=5 // pred_region
        // Predicated region
        $region17: #{tpu_custom_call.1} parent=15 // pred_check
          %p130 = pneg %p51
        $region18: #{tpu_custom_call.1} parent=15 // pred_check_branch
          %132 = sbr.rel (%p130) target = $region20
        $region19: #{tpu_custom_call.1} parent=15 // pred_region
          %s133 = sand.u32 %s41, 1
          %s134 = scalar_lea.sflag [#allocation4], %s133
          %s135 = sand.u32 %s41, 1
          %s136 = smul.addr %s135, 8
          %s137 = scalar_lea.vmem [#allocation3], %s136
          %s138 = sadd.s32 %s24, %s25
          %140 = vsyncadd %s134, 0
          %s141 = smul.addr %s138, 8
          %s142 = scalar_lea.hbm %s0, %s141
          %s144 = sshll.u32 %s142, 4
          %s145 = int_to_ptr.hbm [resolvable:$true] %s144
          %s146 = sshll.u32 %s137, 4
          %s147 = int_to_ptr.vmem [resolvable:$true] %s146
          %149 = dma.hbm_to_vmem [thread:$0]  %s145, 128, %s147, %s134
        $region20: #{tpu_custom_call.1} parent=15 // pred_fallthru
          _
        // Predicated region
        $region21: #{tpu_custom_call.1} parent=15 // pred_check
          %p150 = pneg %p79
        $region22: #{tpu_custom_call.1} parent=15 // pred_check_branch
          %152 = sbr.rel (%p150) target = $region24
        $region23: #{tpu_custom_call.1} parent=15 // pred_region
          %s153 = sand.u32 %s69, 1
          %s154 = scalar_lea.sflag [#allocation7], %s153
          %s155 = sand.u32 %s69, 1
          %s156 = smul.addr %s155, 8
          %s157 = scalar_lea.vmem [#allocation6], %s156
          %s158 = sadd.s32 %s24, %s25
          %160 = vsyncadd %s154, 0
          %s161 = smul.addr %s158, 8
          %s162 = scalar_lea.hbm %s1, %s161
          %s164 = sshll.u32 %s162, 4
          %s165 = int_to_ptr.hbm [resolvable:$true] %s164
          %s166 = sshll.u32 %s157, 4
          %s167 = int_to_ptr.vmem [resolvable:$true] %s166
          %169 = dma.hbm_to_vmem [thread:$0]  %s165, 128, %s167, %s154
        $region24: #{tpu_custom_call.1} parent=15 // pred_fallthru
          _
      $region16: #{tpu_custom_call.1} parent=5 // pred_fallthru
        _
      %p170 = scmp.le.s32.totalorder 1, %s17
      %p171 = scmp.lt.s32.totalorder %s17, 3
      %p172 = pnand %p170, %p171
      %p173 = pneg %p172
      // Predicated region
      $region25: #{tpu_custom_call.1} parent=5 // pred_check
        _
      $region26: #{tpu_custom_call.1} parent=5 // pred_check_branch
        %175 = sbr.rel (%p172) target = $region28
      $region27: #{tpu_custom_call.1} parent=5 // pred_region
        %s176 = ssub.s32 %s17, 1
        %s177 = sand.u32 %s44, 1
        %s178 = scalar_lea.sflag [#allocation4], %s177
        %s179 = sand.u32 %s44, 1
        %s180 = smul.addr %s179, 8
        %s181 = scalar_lea.vmem [#allocation3], %s180
        // Predicated region
        $region29: #{tpu_custom_call.1} parent=27 // pred_check
          %p182 = pneg %p57
        $region30: #{tpu_custom_call.1} parent=27 // pred_check_branch
          %184 = sbr.rel (%p182) target = $region32
        $region31: #{tpu_custom_call.1} parent=27 // pred_region
          %186 = dma.done %s178, 128
        $region32: #{tpu_custom_call.1} parent=27 // pred_fallthru
          _
        %s187 = sand.u32 %s72, 1
        %s188 = scalar_lea.sflag [#allocation7], %s187
        %s189 = sand.u32 %s72, 1
        %s190 = smul.addr %s189, 8
        %s191 = scalar_lea.vmem [#allocation6], %s190
        // Predicated region
        $region33: #{tpu_custom_call.1} parent=27 // pred_check
          %p192 = pneg %p85
        $region34: #{tpu_custom_call.1} parent=27 // pred_check_branch
          %194 = sbr.rel (%p192) target = $region36
        $region35: #{tpu_custom_call.1} parent=27 // pred_region
          %196 = dma.done %s188, 128
        $region36: #{tpu_custom_call.1} parent=27 // pred_fallthru
          _
        %s197 = sand.u32 %s44, 1
        %s198 = scalar_lea.sflag [#allocation4], %s197
        %s199 = sand.u32 %s44, 1
        %s200 = smul.addr %s199, 8
        %s201 = scalar_lea.vmem [#allocation3], %s200
        %p202 = pneg %p57
        %p203 = pneg %p54
        %s204 = sand.u32 %s72, 1
        %s205 = scalar_lea.sflag [#allocation7], %s204
        %s206 = sand.u32 %s72, 1
        %s207 = smul.addr %s206, 8
        %s208 = scalar_lea.vmem [#allocation6], %s207
        %p209 = pneg %p85
        %p210 = pneg %p82
        %p211 = pneg %p111
        %p212 = pneg %p108
        %s213 = sand.u32 %s98, 1
        %s214 = scalar_lea.sflag [#allocation5], %s213
        %s215 = sand.u32 %s98, 1
        %s216 = smul.addr %s215, 8
        %s217 = scalar_lea.vmem [#allocation8], %s216
        %s218 = sadd.s32 %s26, %s27
        %s219 = sadd.s32 %s26, %s27
        %p220 = scmp.eq.s32.totalorder %s27, 0
        // Predicated region
        $region37: #{tpu_custom_call.1} parent=27 // pred_check
          %p221 = pneg %p220
        $region38: #{tpu_custom_call.1} parent=27 // pred_check_branch
          %223 = sbr.rel (%p221) target = $region40
        $region39: #{tpu_custom_call.1} parent=27 // pred_region
          %224 = vst [vmem:[#allocation2] sm:$0xff] 0.0
        $region40: #{tpu_custom_call.1} parent=27 // pred_fallthru
          _
        %v225 = vld [vmem:[%s181] sm:$0xff]
        %v226 = vld [vmem:[%s191] sm:$0xff]
        %v227 = vsub.f32 %v225, 0.5
        %v228 = vsub.f32 0.4, %v227
        %v229 = vmax.f32 %v228, 0.0
        %v230 = vmul.f32 %v229, %v229
        %v231 = vmul.f32 %v226, %v230
        %v232 = vsub.f32 1.0, %v226
        %v233 = vadd.f32 %v227, 0.4
        %v234 = vmax.f32 %v233, 0.0
        %v235 = vmul.f32 %v234, %v234
        %v236 = vmul.f32 %v232, %v235
        %v237 = vmul.f32 %v236, 0.5
        %v238 = vadd.f32 %v231, %v237
        %v239 = vmul.f32 %v238, 0.5
        %v240 = vld [vmem:[#allocation2] sm:$0xff]
        %v241 = vadd.f32 %v239, 0.0
        %v242 = vadd.f32 %v240, %v241
        %243 = vst [vmem:[#allocation2] sm:$0xff] %v242
        // Predicated region
        $region41: #{tpu_custom_call.1} parent=27 // pred_check
          %p244 = pneg %p220
        $region42: #{tpu_custom_call.1} parent=27 // pred_check_branch
          %246 = sbr.rel (%p244) target = $region44
        $region43: #{tpu_custom_call.1} parent=27 // pred_region
          %v247 = vld [vmem:[#allocation2] sm:$0xff]
          %248 = vst [vmem:[%s217] sm:$0xff] %v247
        $region44: #{tpu_custom_call.1} parent=27 // pred_fallthru
          _
        %s249 = sand.u32 %s98, 1
        %s250 = scalar_lea.sflag [#allocation5], %s249
        %s251 = sand.u32 %s98, 1
        %s252 = smul.addr %s251, 8
        %s253 = scalar_lea.vmem [#allocation8], %s252
        // Predicated region
        $region45: #{tpu_custom_call.1} parent=27 // pred_check
          %p254 = pneg %p108
        $region46: #{tpu_custom_call.1} parent=27 // pred_check_branch
          %256 = sbr.rel (%p254) target = $region48
        $region47: #{tpu_custom_call.1} parent=27 // pred_region
          %258 = vsyncadd %s250, 0
          %s259 = smul.addr %s26, 8
          %s260 = scalar_lea.hbm %s2, %s259
          %s262 = sshll.u32 %s253, 4
          %s263 = int_to_ptr.vmem [resolvable:$true] %s262
          %s264 = sshll.u32 %s260, 4
          %s265 = int_to_ptr.hbm [resolvable:$true] %s264
          %267 = dma.vmem_to_hbm [thread:$0]  %s263, 128, %s265, %s250
        $region48: #{tpu_custom_call.1} parent=27 // pred_fallthru
          _
      $region28: #{tpu_custom_call.1} parent=5 // pred_fallthru
        _
      %p268 = scmp.le.s32.totalorder 2, %s17
      // Predicated region
      $region49: #{tpu_custom_call.1} parent=5 // pred_check
        %p269 = pneg %p268
      $region50: #{tpu_custom_call.1} parent=5 // pred_check_branch
        %271 = sbr.rel (%p269) target = $region52
      $region51: #{tpu_custom_call.1} parent=5 // pred_region
        %s272 = ssub.s32 %s17, 2
        // Predicated region
        $region53: #{tpu_custom_call.1} parent=51 // pred_check
          %p273 = pneg %p114
        $region54: #{tpu_custom_call.1} parent=51 // pred_check_branch
          %275 = sbr.rel (%p273) target = $region56
        $region55: #{tpu_custom_call.1} parent=51 // pred_region
          %s276 = sand.u32 %s99, 1
          %s277 = scalar_lea.sflag [#allocation5], %s276
          %s278 = sand.u32 %s99, 1
          %s279 = smul.addr %s278, 8
          %s280 = scalar_lea.vmem [#allocation8], %s279
          %282 = dma.done %s277, 128
        $region56: #{tpu_custom_call.1} parent=51 // pred_fallthru
          _
      $region52: #{tpu_custom_call.1} parent=5 // pred_fallthru
        _
    $region6: #{tpu_custom_call.1} parent=1 // loop_footer
      %s21 = sadd.s32 1, %s17
    $region7: #{tpu_custom_call.1} parent=1 // loop_footer_branch
      %16 = sbr.rel target = $region3
    $region8: #{tpu_custom_call.1} parent=1 // loop_exit
      _
    %283 = vsyncpa [#allocation4], 1
    %s284 = scalar_lea.sflag [#allocation4], 1
    %285 = vsyncpa %s284, 1
    %286 = vsyncpa [#allocation7], 1
    %s287 = scalar_lea.sflag [#allocation7], 1
    %288 = vsyncpa %s287, 1
    %289 = vsyncpa [#allocation5], 1
    %s290 = scalar_lea.sflag [#allocation5], 1
    %291 = vsyncpa %s290, 1

</llo_original>
